<compile_context>
chip_gen: v5e
topology: v5e:2x2
jax: 0.10.0
libtpu: 0.0.40
codegen_flags: <defaults>
</compile_context>

<pallas_src>
import functools

import jax
import jax.numpy as jnp
from jax import lax
from jax.experimental import pallas as pl
from jax.experimental.pallas import tpu as pltpu


def _round_up(n, m):
    return ((n + m - 1) // m) * m


def _pad_to(arr, shape, fill=0.0):
    pads = [(0, s - d) for d, s in zip(arr.shape, shape)]
    return jnp.pad(arr, pads, constant_values=fill)


def _prelu(x, alpha):
    # nn.PReLU(): max(0, x) + alpha * min(0, x)  (single shared parameter)
    return jnp.where(x >= 0, x, alpha * x)


def classification_net_kernel(
    alphas_ref,              # SMEM (2,): [alpha_embed, alpha_cls]
    x_ref,                   # (TB, D_in)  batch-major input tile
    w1t_ref, b1t_ref,        # embedding fc1^T: (Hp, D_in), (Hp, 1)
    w2t_ref, b2t_ref,        # embedding fc2^T: (Ep, Hp),   (Ep, 1)
    wct_ref, bct_ref,        # classifier^T:    (Cp, Ep),   (Cp, 1)  (pad bias -1e30)
    out_ref,                 # (Cp, TB) class-major log-probabilities
    *, n_emb,
):
    a1 = alphas_ref[0]
    a2 = alphas_ref[1]

    x = x_ref[...]                                           # (TB, D_in)

    # --- embedding_net, computed transposed: h^T = W1^T @ x^T  -> (Hp, TB) ------
    # NT contraction (contract on D_in of both operands); batch lands on lanes.
    ht = lax.dot_general(
        w1t_ref[...], x,
        dimension_numbers=(((1,), (1,)), ((), ())),
        preferred_element_type=jnp.float32,
    ) + b1t_ref[...]
    ht = _prelu(ht, a1)

    # y^T = W2^T @ h^T -> (Ep, TB); padded embedding rows are exactly 0.
    yt = jnp.dot(w2t_ref[...], ht, preferred_element_type=jnp.float32) + b2t_ref[...]

    # --- ClassificationNet.nonlinear (PReLU) ------------------------------------
    yt = _prelu(yt, a2)

    # --- fc1: K=2 contraction as two VPU FMAs over the small (Cp, TB) tile ------
    logits = bct_ref[...]                                    # (Cp, 1), lane-broadcasts
    for j in range(n_emb):                                   # n_emb == 2 (static)
        logits = logits + wct_ref[:, j:j + 1] * yt[j:j + 1, :]

    # --- log_softmax over the class (sublane) axis; padded classes -> exp()=0 ---
    m = jnp.max(logits, axis=0, keepdims=True)               # (1, TB)
    shifted = logits - m
    lse = jnp.log(jnp.sum(jnp.exp(shifted), axis=0, keepdims=True))
    out_ref[...] = shifted - lse


def classification_net_forward(x, params, *, tb=1024):
    """x: (B, D_in) float32. Returns (B, n_classes) log-probabilities."""
    (w1, b1, a1, w2, b2, a2, wc, bc) = params
    B, D_in = x.shape
    H = w1.shape[1]
    E = w2.shape[1]                      # embedding dim (2)
    C = wc.shape[1]                      # n_classes

    Hp = _round_up(H, 128)               # hidden width (MXU-friendly contraction)
    Ep = _round_up(E, 8)                 # embedding rows on sublanes
    Cp = _round_up(C, 8)                 # class rows on sublanes

    # One-time transposed / padded weight prep (tiny, VMEM-resident in-kernel).
    w1t = _pad_to(w1.T, (Hp, D_in))
    b1t = _pad_to(b1.reshape(H, 1), (Hp, 1))
    w2t = _pad_to(w2.T, (Ep, Hp))
    b2t = _pad_to(b2.reshape(E, 1), (Ep, 1))
    wct = _pad_to(wc.T, (Cp, Ep))
    # Padded classes get a huge negative bias so exp() underflows to exactly 0.
    bct = _pad_to(bc.reshape(C, 1), (Cp, 1), fill=-1e30)

    alphas = jnp.stack([a1.reshape(()), a2.reshape(())]).astype(jnp.float32)  # (2,)

    # Batch tile: batch sits on the LANE axis of the output, so keep TB a multiple
    # of 128 when tiling; cap at ~ceil(B/2) so v7x's two TCs both get grid steps.
    if B <= 128:
        TB = B                                    # single whole-array block
    else:
        TB = max(128, min(tb, _round_up(pl.cdiv(B, 2), 128)))
    grid = (pl.cdiv(B, TB),)                      # ragged last block handled by Pallas

    kernel = functools.partial(classification_net_kernel, n_emb=E)

    out = pl.pallas_call(
        kernel,
        out_shape=jax.ShapeDtypeStruct((Cp, B), jnp.float32),
        grid=grid,
        in_specs=[
            pl.BlockSpec(memory_space=pltpu.SMEM),          # alphas (whole, SMEM)
            pl.BlockSpec((TB, D_in), lambda i: (i, 0)),     # x: batch-tiled
            pl.BlockSpec((Hp, D_in), lambda i: (0, 0)),     # w1^T (resident)
            pl.BlockSpec((Hp, 1),    lambda i: (0, 0)),     # b1^T
            pl.BlockSpec((Ep, Hp),   lambda i: (0, 0)),     # w2^T
            pl.BlockSpec((Ep, 1),    lambda i: (0, 0)),     # b2^T
            pl.BlockSpec((Cp, Ep),   lambda i: (0, 0)),     # wc^T
            pl.BlockSpec((Cp, 1),    lambda i: (0, 0)),     # bc^T
        ],
        out_specs=pl.BlockSpec((Cp, TB), lambda i: (0, i)),
        compiler_params=pltpu.CompilerParams(
            dimension_semantics=("parallel",),              # v7x: shard batch over both TCs
        ),
    )(alphas, x, w1t, b1t, w2t, b2t, wct, bct)

    # Class-major (Cp, B) -> (B, C); touches only C*B elements (no 128-lane pad).
    return out[:C, :].T


def make_params(key, d_in, hidden, n_classes):
    ks = jax.random.split(key, 6)
    emb_dim = 2  # fc1 = nn.Linear(2, n_classes) implies a 2-dim embedding
    w1 = jax.random.normal(ks[0], (d_in, hidden), jnp.float32) * 0.1
    b1 = jax.random.normal(ks[1], (1, hidden), jnp.float32) * 0.1
    w2 = jax.random.normal(ks[2], (hidden, emb_dim), jnp.float32) * 0.1
    b2 = jax.random.normal(ks[3], (1, emb_dim), jnp.float32) * 0.1
    wc = jax.random.normal(ks[4], (emb_dim, n_classes), jnp.float32) * 0.1
    bc = jax.random.normal(ks[5], (1, n_classes), jnp.float32) * 0.1
    # nn.PReLU() default init: single shared parameter = 0.25
    a1 = jnp.full((1,), 0.25, jnp.float32)
    a2 = jnp.full((1,), 0.25, jnp.float32)
    return (w1, b1, a1, w2, b2, a2, wc, bc)


def reference_forward(x, params):
    (w1, b1, a1, w2, b2, a2, wc, bc) = params
    h = x @ w1 + b1
    h = jnp.where(h >= 0, h, a1[0] * h)
    e = h @ w2 + b2
    e = jnp.where(e >= 0, e, a2[0] * e)
    logits = e @ wc + bc
    return jax.nn.log_softmax(logits, axis=-1)


if __name__ == "__main__":
    key = jax.random.PRNGKey(0)
    k_x, k_x2, k_p = jax.random.split(key, 3)

    D_IN, HIDDEN, N_CLASSES = 32, 32, 10
    params = make_params(k_p, D_IN, HIDDEN, N_CLASSES)

    fwd = jax.jit(classification_net_forward)

    # Small batch (single whole-array block).
    B1 = 8
    x1 = jax.random.normal(k_x, (B1, D_IN), jnp.float32)
    s1 = jax.block_until_ready(fwd(x1, params))
    assert s1.shape == (B1, N_CLASSES)
    assert jnp.allclose(s1, reference_forward(x1, params), atol=1e-5, rtol=1e-5)

    # Larger batch: exercises the 2-step "parallel" grid with lane-dense stores.
    B2 = 256
    x2 = jax.random.normal(k_x2, (B2, D_IN), jnp.float32)
    s2 = jax.block_until_ready(fwd(x2, params))
    assert s2.shape == (B2, N_CLASSES)
    assert jnp.allclose(s2, reference_forward(x2, params), atol=1e-5, rtol=1e-5)

    print("KERNEL_OK")
</pallas_src>

<mosaic_0001>
module attributes {stable_mosaic.version = 11 : i64} {
  func.func @classification_net_kernel(%arg0: i32, %arg1: memref<2xf32, #tpu.memory_space<smem>>, %arg2: memref<8x32xf32, #tpu.memory_space<vmem>>, %arg3: memref<128x32xf32, #tpu.memory_space<vmem>>, %arg4: memref<128x1xf32, #tpu.memory_space<vmem>>, %arg5: memref<8x128xf32, #tpu.memory_space<vmem>>, %arg6: memref<8x1xf32, #tpu.memory_space<vmem>>, %arg7: memref<16x8xf32, #tpu.memory_space<vmem>>, %arg8: memref<16x1xf32, #tpu.memory_space<vmem>>, %arg9: memref<16x8xf32, #tpu.memory_space<vmem>>) attributes {dimension_semantics = [#tpu.dimension_semantics<parallel>], iteration_bounds = array<i64: 1>, scalar_prefetch = 0 : i64, scratch_operands = 0 : i64, tpu.core_type = #tpu.core_type<tc>, window_params = [{transform_indices = @transform_0, window_bounds = array<i64: 2>}, {transform_indices = @transform_1, window_bounds = array<i64: 8, 32>}, {pipeline_mode = #tpu.pipeline_mode<synchronous>, transform_indices = @transform_2, window_bounds = array<i64: 128, 32>}, {pipeline_mode = #tpu.pipeline_mode<synchronous>, transform_indices = @transform_3, window_bounds = array<i64: 128, 1>}, {pipeline_mode = #tpu.pipeline_mode<synchronous>, transform_indices = @transform_4, window_bounds = array<i64: 8, 128>}, {pipeline_mode = #tpu.pipeline_mode<synchronous>, transform_indices = @transform_5, window_bounds = array<i64: 8, 1>}, {pipeline_mode = #tpu.pipeline_mode<synchronous>, transform_indices = @transform_6, window_bounds = array<i64: 16, 8>}, {pipeline_mode = #tpu.pipeline_mode<synchronous>, transform_indices = @transform_7, window_bounds = array<i64: 16, 1>}, {transform_indices = @transform_8, window_bounds = array<i64: 16, 8>}]} {
    %c0 = arith.constant 0 : index
    %0 = memref.load %arg1[%c0] : memref<2xf32, #tpu.memory_space<smem>>
    %c1 = arith.constant 1 : index
    %1 = memref.load %arg1[%c1] : memref<2xf32, #tpu.memory_space<smem>>
    %c0_0 = arith.constant 0 : index
    %c0_1 = arith.constant 0 : index
    %2 = vector.load %arg2[%c0_0, %c0_1] : memref<8x32xf32, #tpu.memory_space<vmem>>, vector<8x32xf32>
    %c0_2 = arith.constant 0 : index
    %c0_3 = arith.constant 0 : index
    %3 = vector.load %arg3[%c0_2, %c0_3] : memref<128x32xf32, #tpu.memory_space<vmem>>, vector<128x32xf32>
    %cst = arith.constant dense<0.000000e+00> : vector<128x8xf32>
    %4 = tpu.matmul %3, %2, %cst {dimension_numbers = #tpu.dot_dimension_numbers<[1], [1], [0], [0], [0, 0, 1, 0], [], []>} : vector<128x32xf32>, vector<8x32xf32>, vector<128x8xf32> -> vector<128x8xf32>
    %c0_4 = arith.constant 0 : index
    %c0_5 = arith.constant 0 : index
    %5 = vector.load %arg4[%c0_4, %c0_5] : memref<128x1xf32, #tpu.memory_space<vmem>>, vector<128x1xf32>
    %6 = vector.broadcast %5 : vector<128x1xf32> to vector<128x8xf32>
    %7 = arith.addf %4, %6 : vector<128x8xf32>
    %cst_6 = arith.constant 0.000000e+00 : f32
    %8 = vector.broadcast %cst_6 : f32 to vector<128x8xf32>
    %9 = arith.cmpf oge, %7, %8 : vector<128x8xf32>
    %10 = vector.broadcast %0 : f32 to vector<128x8xf32>
    %11 = arith.mulf %10, %7 : vector<128x8xf32>
    %12 = arith.select %9, %7, %11 : vector<128x8xi1>, vector<128x8xf32>
    %c0_7 = arith.constant 0 : index
    %c0_8 = arith.constant 0 : index
    %13 = vector.load %arg5[%c0_7, %c0_8] : memref<8x128xf32, #tpu.memory_space<vmem>>, vector<8x128xf32>
    %cst_9 = arith.constant dense<0.000000e+00> : vector<8x8xf32>
    %14 = tpu.matmul %13, %12, %cst_9 {dimension_numbers = #tpu.dot_dimension_numbers<[1], [0], [0], [1], [0, 0, 1, 1], [], []>} : vector<8x128xf32>, vector<128x8xf32>, vector<8x8xf32> -> vector<8x8xf32>
    %c0_10 = arith.constant 0 : index
    %c0_11 = arith.constant 0 : index
    %15 = vector.load %arg6[%c0_10, %c0_11] : memref<8x1xf32, #tpu.memory_space<vmem>>, vector<8x1xf32>
    %16 = vector.broadcast %15 : vector<8x1xf32> to vector<8x8xf32>
    %17 = arith.addf %14, %16 : vector<8x8xf32>
    %cst_12 = arith.constant 0.000000e+00 : f32
    %18 = vector.broadcast %cst_12 : f32 to vector<8x8xf32>
    %19 = arith.cmpf oge, %17, %18 : vector<8x8xf32>
    %20 = vector.broadcast %1 : f32 to vector<8x8xf32>
    %21 = arith.mulf %20, %17 : vector<8x8xf32>
    %22 = arith.select %19, %17, %21 : vector<8x8xi1>, vector<8x8xf32>
    %c0_13 = arith.constant 0 : index
    %c0_14 = arith.constant 0 : index
    %23 = vector.load %arg8[%c0_13, %c0_14] : memref<16x1xf32, #tpu.memory_space<vmem>>, vector<16x1xf32>
    %c0_15 = arith.constant 0 : index
    %c0_16 = arith.constant 0 : index
    %24 = vector.load %arg7[%c0_15, %c0_16] : memref<16x8xf32, #tpu.memory_space<vmem>>, vector<16x1xf32>
    %25 = vector.extract_strided_slice %22 {offsets = [0, 0], sizes = [1, 8], strides = [1, 1]} : vector<8x8xf32> to vector<1x8xf32>
    %26 = vector.broadcast %24 : vector<16x1xf32> to vector<16x8xf32>
    %27 = vector.broadcast %25 : vector<1x8xf32> to vector<16x8xf32>
    %28 = arith.mulf %26, %27 : vector<16x8xf32>
    %29 = vector.broadcast %23 : vector<16x1xf32> to vector<16x8xf32>
    %30 = arith.addf %29, %28 : vector<16x8xf32>
    %c0_17 = arith.constant 0 : index
    %c1_18 = arith.constant 1 : index
    %31 = vector.load %arg7[%c0_17, %c1_18] : memref<16x8xf32, #tpu.memory_space<vmem>>, vector<16x1xf32>
    %32 = vector.extract_strided_slice %22 {offsets = [1, 0], sizes = [1, 8], strides = [1, 1]} : vector<8x8xf32> to vector<1x8xf32>
    %33 = vector.broadcast %31 : vector<16x1xf32> to vector<16x8xf32>
    %34 = vector.broadcast %32 : vector<1x8xf32> to vector<16x8xf32>
    %35 = arith.mulf %33, %34 : vector<16x8xf32>
    %36 = arith.addf %30, %35 : vector<16x8xf32>
    %cst_19 = arith.constant dense<0xFF800000> : vector<8xf32>
    %37 = vector.multi_reduction <maximumf>, %36, %cst_19 [0] : vector<16x8xf32> to vector<8xf32>
    %38 = vector.shape_cast %37 : vector<8xf32> to vector<1x8xf32>
    %39 = vector.broadcast %38 : vector<1x8xf32> to vector<16x8xf32>
    %40 = arith.subf %36, %39 : vector<16x8xf32>
    %41 = math.exp %40 : vector<16x8xf32>
    %cst_20 = arith.constant dense<0.000000e+00> : vector<8xf32>
    %42 = vector.multi_reduction <add>, %41, %cst_20 [0] : vector<16x8xf32> to vector<8xf32>
    %43 = vector.shape_cast %42 : vector<8xf32> to vector<1x8xf32>
    %44 = math.log %43 : vector<1x8xf32>
    %45 = vector.broadcast %44 : vector<1x8xf32> to vector<16x8xf32>
    %46 = arith.subf %40, %45 : vector<16x8xf32>
    %c0_21 = arith.constant 0 : index
    %c0_22 = arith.constant 0 : index
    %47 = vector.load %arg9[%c0_21, %c0_22] : memref<16x8xf32, #tpu.memory_space<vmem>>, vector<16x8xf32>
    tpu.vector_store %arg9[%c0_21, %c0_22], %46 {strides = array<i32>} : memref<16x8xf32, #tpu.memory_space<vmem>>, vector<16x8xf32>,
    return
  }
  func.func @transform_0(%arg0: i32) -> i32 {
    %c0_i32 = arith.constant 0 : i32
    %c0_i32_0 = arith.constant 0 : i32
    return %c0_i32 : i32
  }
  func.func @transform_1(%arg0: i32) -> (i32, i32) {
    %c0_i32 = arith.constant 0 : i32
    %c0_i32_0 = arith.constant 0 : i32
    return %arg0, %c0_i32 : i32, i32
  }
  func.func @transform_2(%arg0: i32) -> (i32, i32) {
    %c0_i32 = arith.constant 0 : i32
    %c0_i32_0 = arith.constant 0 : i32
    %c0_i32_1 = arith.constant 0 : i32
    return %c0_i32, %c0_i32_0 : i32, i32
  }
  func.func @transform_3(%arg0: i32) -> (i32, i32) {
    %c0_i32 = arith.constant 0 : i32
    %c0_i32_0 = arith.constant 0 : i32
    %c0_i32_1 = arith.constant 0 : i32
    return %c0_i32, %c0_i32_0 : i32, i32
  }
  func.func @transform_4(%arg0: i32) -> (i32, i32) {
    %c0_i32 = arith.constant 0 : i32
    %c0_i32_0 = arith.constant 0 : i32
    %c0_i32_1 = arith.constant 0 : i32
    return %c0_i32, %c0_i32_0 : i32, i32
  }
  func.func @transform_5(%arg0: i32) -> (i32, i32) {
    %c0_i32 = arith.constant 0 : i32
    %c0_i32_0 = arith.constant 0 : i32
    %c0_i32_1 = arith.constant 0 : i32
    return %c0_i32, %c0_i32_0 : i32, i32
  }
  func.func @transform_6(%arg0: i32) -> (i32, i32) {
    %c0_i32 = arith.constant 0 : i32
    %c0_i32_0 = arith.constant 0 : i32
    %c0_i32_1 = arith.constant 0 : i32
    return %c0_i32, %c0_i32_0 : i32, i32
  }
  func.func @transform_7(%arg0: i32) -> (i32, i32) {
    %c0_i32 = arith.constant 0 : i32
    %c0_i32_0 = arith.constant 0 : i32
    %c0_i32_1 = arith.constant 0 : i32
    return %c0_i32, %c0_i32_0 : i32, i32
  }
  func.func @transform_8(%arg0: i32) -> (i32, i32) {
    %c0_i32 = arith.constant 0 : i32
    %c0_i32_0 = arith.constant 0 : i32
    return %c0_i32, %arg0 : i32, i32
  }
}

</mosaic_0001>

<llo_original>
// kernel: classification_net_forward.1
$region0: #{classification_net_forward.1}
  #allocation0 [shape = 'u32[]', space=smem, size = 0x4, offset = 0x4, fixed_abs, tag = 'smem constant byte address 0x4 - core index']
  #allocation1 [shape = 'u32[72,128]{1,0:T(1,128)}', space=vmem, size = 0x9000, scoped, tag = 'internal scratch']
  %s0 = inlined_call_operand.vmem [shape: f32[2], index: 0, kind: input, shape index: {}]
  %s1 = inlined_call_operand.vmem [shape: f32[8,32], index: 1, kind: input, shape index: {}]
  %s2 = inlined_call_operand.vmem [shape: f32[128,32], index: 2, kind: input, shape index: {}]
  %s3 = inlined_call_operand.vmem [shape: f32[128,1], index: 3, kind: input, shape index: {}]
  %s4 = inlined_call_operand.vmem [shape: f32[8,128], index: 4, kind: input, shape index: {}]
  %s5 = inlined_call_operand.vmem [shape: f32[8,1], index: 5, kind: input, shape index: {}]
  %s6 = inlined_call_operand.vmem [shape: f32[16,8], index: 6, kind: input, shape index: {}]
  %s7 = inlined_call_operand.vmem [shape: f32[16,1], index: 7, kind: input, shape index: {}]
  %s8 = inlined_call_operand.vmem [shape: f32[16,8], index: 8, kind: output, shape index: {}]
  %s9 = sld [smem:[#allocation0]]
  $region46: #{classification_net_forward.1} parent=0
    _
  %s11 = ssub.s32 1, %s9
  %s12 = scalar_select 0, %s11, %s9
  $region1: #{classification_net_forward.1} parent=0
    #allocation2 [shape = 'u8[512]{0}', space=smem, size = 0x200, scoped, tag = 'input window, operand 0, single buffered']
    #allocation3 [shape = 's32[1]{0}', space=sflag, size = 0x4, scoped, tag = 'scoped memory for classification_net_forward.1']
    %13 = vsyncpa [#allocation3], 0
    // Predicated region
    $region2: #{classification_net_forward.1} parent=1 // pred_check
      _
    $region3: #{classification_net_forward.1} parent=1 // pred_check_branch
      %15 = sbr.rel (0) target = $region5
    $region4: #{classification_net_forward.1} parent=1 // pred_region
      %17 = vsyncadd [#allocation3], 0
      %s19 = sshll.u32 %s0, 4
      %s20 = int_to_ptr.vmem [resolvable:$true] %s19
      %22 = dma.vmem_to_smem %s20, 16, [#allocation2], [#allocation3]
    $region5: #{classification_net_forward.1} parent=1 // pred_fallthru
      _
    // Predicated region
    $region6: #{classification_net_forward.1} parent=1 // pred_check
      _
    $region7: #{classification_net_forward.1} parent=1 // pred_check_branch
      %24 = sbr.rel (0) target = $region9
    $region8: #{classification_net_forward.1} parent=1 // pred_region
      _
    $region9: #{classification_net_forward.1} parent=1 // pred_fallthru
      _
    // Predicated region
    $region10: #{classification_net_forward.1} parent=1 // pred_check
      _
    $region11: #{classification_net_forward.1} parent=1 // pred_check_branch
      %26 = sbr.rel (0) target = $region13
    $region12: #{classification_net_forward.1} parent=1 // pred_region
      _
    $region13: #{classification_net_forward.1} parent=1 // pred_fallthru
      _
    // Predicated region
    $region14: #{classification_net_forward.1} parent=1 // pred_check
      _
    $region15: #{classification_net_forward.1} parent=1 // pred_check_branch
      %28 = sbr.rel (0) target = $region17
    $region16: #{classification_net_forward.1} parent=1 // pred_region
      _
    $region17: #{classification_net_forward.1} parent=1 // pred_fallthru
      _
    // Predicated region
    $region18: #{classification_net_forward.1} parent=1 // pred_check
      _
    $region19: #{classification_net_forward.1} parent=1 // pred_check_branch
      %30 = sbr.rel (0) target = $region21
    $region20: #{classification_net_forward.1} parent=1 // pred_region
      _
    $region21: #{classification_net_forward.1} parent=1 // pred_fallthru
      _
    // Predicated region
    $region22: #{classification_net_forward.1} parent=1 // pred_check
      _
    $region23: #{classification_net_forward.1} parent=1 // pred_check_branch
      %32 = sbr.rel (0) target = $region25
    $region24: #{classification_net_forward.1} parent=1 // pred_region
      _
    $region25: #{classification_net_forward.1} parent=1 // pred_fallthru
      _
    // Predicated region
    $region26: #{classification_net_forward.1} parent=1 // pred_check
      _
    $region27: #{classification_net_forward.1} parent=1 // pred_check_branch
      %34 = sbr.rel (0) target = $region29
    $region28: #{classification_net_forward.1} parent=1 // pred_region
      _
    $region29: #{classification_net_forward.1} parent=1 // pred_fallthru
      _
    // Predicated region
    $region30: #{classification_net_forward.1} parent=1 // pred_check
      _
    $region31: #{classification_net_forward.1} parent=1 // pred_check_branch
      %36 = sbr.rel (0) target = $region33
    $region32: #{classification_net_forward.1} parent=1 // pred_region
      _
    $region33: #{classification_net_forward.1} parent=1 // pred_fallthru
      _
    // Predicated region
    $region34: #{classification_net_forward.1} parent=1 // pred_check
      _
    $region35: #{classification_net_forward.1} parent=1 // pred_check_branch
      %38 = sbr.rel (0) target = $region37
    $region36: #{classification_net_forward.1} parent=1 // pred_region
      %40 = dma.done [#allocation3], 16
    $region37: #{classification_net_forward.1} parent=1 // pred_fallthru
      _
    %41 = sfence
    %s42 = sld [smem:[#allocation2]]
    %s43 = sld [smem:[#allocation2 + $0x1]]
    %v44 = vld [vmem:[%s1] sm:$0xff]
    %v45 = vld [vmem:[%s2] sm:$0xff]
    %v46 = vld [vmem:[%s2 + $0x8] sm:$0xff]
    %v47 = vld [vmem:[%s2 + $0x10] sm:$0xff]
    %v48 = vld [vmem:[%s2 + $0x18] sm:$0xff]
    %v49 = vld [vmem:[%s2 + $0x20] sm:$0xff]
    %v50 = vld [vmem:[%s2 + $0x28] sm:$0xff]
    %v51 = vld [vmem:[%s2 + $0x30] sm:$0xff]
    %v52 = vld [vmem:[%s2 + $0x38] sm:$0xff]
    %v53 = vld [vmem:[%s2 + $0x40] sm:$0xff]
    %v54 = vld [vmem:[%s2 + $0x48] sm:$0xff]
    %v55 = vld [vmem:[%s2 + $0x50] sm:$0xff]
    %v56 = vld [vmem:[%s2 + $0x58] sm:$0xff]
    %v57 = vld [vmem:[%s2 + $0x60] sm:$0xff]
    %v58 = vld [vmem:[%s2 + $0x68] sm:$0xff]
    %v59 = vld [vmem:[%s2 + $0x70] sm:$0xff]
    %v60 = vld [vmem:[%s2 + $0x78] sm:$0xff]
    %v61 = vld [vmem:[%s3] sm:$0xff]
    %v62 = vld [vmem:[%s3 + $0x8] sm:$0xff]
    %v63 = vld [vmem:[%s3 + $0x10] sm:$0xff]
    %v64 = vld [vmem:[%s3 + $0x18] sm:$0xff]
    %v65 = vld [vmem:[%s3 + $0x20] sm:$0xff]
    %v66 = vld [vmem:[%s3 + $0x28] sm:$0xff]
    %v67 = vld [vmem:[%s3 + $0x30] sm:$0xff]
    %v68 = vld [vmem:[%s3 + $0x38] sm:$0xff]
    %v69 = vld [vmem:[%s3 + $0x40] sm:$0xff]
    %v70 = vld [vmem:[%s3 + $0x48] sm:$0xff]
    %v71 = vld [vmem:[%s3 + $0x50] sm:$0xff]
    %v72 = vld [vmem:[%s3 + $0x58] sm:$0xff]
    %v73 = vld [vmem:[%s3 + $0x60] sm:$0xff]
    %v74 = vld [vmem:[%s3 + $0x68] sm:$0xff]
    %v75 = vld [vmem:[%s3 + $0x70] sm:$0xff]
    %v76 = vld [vmem:[%s3 + $0x78] sm:$0xff]
    %78 = vset.pattern.permute.xlu0 0
    %79 = vperm.xlu0 %78, %v61
    %v80 = vpop.permute.xlu0 %79
    %83 = vset.pattern.permute.xlu0 0
    %84 = vperm.xlu0 %83, %v62
    %v85 = vpop.permute.xlu0 %84
    %88 = vset.pattern.permute.xlu0 0
    %89 = vperm.xlu0 %88, %v63
    %v90 = vpop.permute.xlu0 %89
    %93 = vset.pattern.permute.xlu0 0
    %94 = vperm.xlu0 %93, %v64
    %v95 = vpop.permute.xlu0 %94
    %98 = vset.pattern.permute.xlu0 0
    %99 = vperm.xlu0 %98, %v65
    %v100 = vpop.permute.xlu0 %99
    %103 = vset.pattern.permute.xlu0 0
    %104 = vperm.xlu0 %103, %v66
    %v105 = vpop.permute.xlu0 %104
    %108 = vset.pattern.permute.xlu0 0
    %109 = vperm.xlu0 %108, %v67
    %v110 = vpop.permute.xlu0 %109
    %113 = vset.pattern.permute.xlu0 0
    %114 = vperm.xlu0 %113, %v68
    %v115 = vpop.permute.xlu0 %114
    %118 = vset.pattern.permute.xlu0 0
    %119 = vperm.xlu0 %118, %v69
    %v120 = vpop.permute.xlu0 %119
    %123 = vset.pattern.permute.xlu0 0
    %124 = vperm.xlu0 %123, %v70
    %v125 = vpop.permute.xlu0 %124
    %128 = vset.pattern.permute.xlu0 0
    %129 = vperm.xlu0 %128, %v71
    %v130 = vpop.permute.xlu0 %129
    %133 = vset.pattern.permute.xlu0 0
    %134 = vperm.xlu0 %133, %v72
    %v135 = vpop.permute.xlu0 %134
    %138 = vset.pattern.permute.xlu0 0
    %139 = vperm.xlu0 %138, %v73
    %v140 = vpop.permute.xlu0 %139
    %143 = vset.pattern.permute.xlu0 0
    %144 = vperm.xlu0 %143, %v74
    %v145 = vpop.permute.xlu0 %144
    %148 = vset.pattern.permute.xlu0 0
    %149 = vperm.xlu0 %148, %v75
    %v150 = vpop.permute.xlu0 %149
    %153 = vset.pattern.permute.xlu0 0
    %154 = vperm.xlu0 %153, %v76
    %v155 = vpop.permute.xlu0 %154
    %vm157 = vcmask 261120
    %v159 = vsel %vm157, %v45, 0
    %v162 = vsel %vm157, %v46, 0
    %v165 = vsel %vm157, %v47, 0
    %v168 = vsel %vm157, %v48, 0
    %v171 = vsel %vm157, %v49, 0
    %v174 = vsel %vm157, %v50, 0
    %v177 = vsel %vm157, %v51, 0
    %v180 = vsel %vm157, %v52, 0
    %v183 = vsel %vm157, %v53, 0
    %v186 = vsel %vm157, %v54, 0
    %v189 = vsel %vm157, %v55, 0
    %v192 = vsel %vm157, %v56, 0
    %v195 = vsel %vm157, %v57, 0
    %v198 = vsel %vm157, %v58, 0
    %v201 = vsel %vm157, %v59, 0
    %v204 = vsel %vm157, %v60, 0
    %v207 = vsel %vm157, %v44, 0
    %209 = vmatpush.xpose.msra.mxu0 0.0
    %210 = vmatpush.xpose.msra.mxu0 0.0
    %211 = vmatpush.xpose.msra.mxu0 0.0
    %212 = vmatpush.xpose.msra.mxu0 0.0
    %213 = vmatpush.xpose.msra.mxu0 0.0
    %214 = vmatpush.xpose.msra.mxu0 0.0
    %215 = vmatpush.xpose.msra.mxu0 0.0
    %216 = vmatpush.xpose.msra.mxu0 0.0
    %217 = vmatpush.xpose.msra.mxu0 0.0
    %218 = vmatpush.xpose.msra.mxu0 0.0
    %219 = vmatpush.xpose.msra.mxu0 0.0
    %220 = vmatpush.xpose.msra.mxu0 0.0
    %221 = vmatpush.xpose.msra.mxu0 0.0
    %222 = vmatpush.xpose.msra.mxu0 0.0
    %223 = vmatpush.xpose.msra.mxu0 0.0
    %224 = vmatpush.xpose.msra.mxu0 %v207
    %225 = vmatmul.f32.gmra.mxu0 %v159
    %v226 = vpop.f32.mrf.mxu0
    %v227 = vadd.f32 %v80, %v226
    %228 = vmatmul.f32.gmra.mxu0 %v162
    %v229 = vpop.f32.mrf.mxu0
    %v230 = vadd.f32 %v85, %v229
    %231 = vmatmul.f32.gmra.mxu0 %v165
    %v232 = vpop.f32.mrf.mxu0
    %v233 = vadd.f32 %v90, %v232
    %234 = vmatmul.f32.gmra.mxu0 %v168
    %v235 = vpop.f32.mrf.mxu0
    %v236 = vadd.f32 %v95, %v235
    %237 = vmatmul.f32.gmra.mxu0 %v171
    %v238 = vpop.f32.mrf.mxu0
    %v239 = vadd.f32 %v100, %v238
    %240 = vmatmul.f32.gmra.mxu0 %v174
    %v241 = vpop.f32.mrf.mxu0
    %v242 = vadd.f32 %v105, %v241
    %243 = vmatmul.f32.gmra.mxu0 %v177
    %v244 = vpop.f32.mrf.mxu0
    %v245 = vadd.f32 %v110, %v244
    %246 = vmatmul.f32.gmra.mxu0 %v180
    %v247 = vpop.f32.mrf.mxu0
    %v248 = vadd.f32 %v115, %v247
    %249 = vmatmul.f32.gmra.mxu0 %v183
    %v250 = vpop.f32.mrf.mxu0
    %v251 = vadd.f32 %v120, %v250
    %252 = vmatmul.f32.gmra.mxu0 %v186
    %v253 = vpop.f32.mrf.mxu0
    %v254 = vadd.f32 %v125, %v253
    %255 = vmatmul.f32.gmra.mxu0 %v189
    %v256 = vpop.f32.mrf.mxu0
    %v257 = vadd.f32 %v130, %v256
    %258 = vmatmul.f32.gmra.mxu0 %v192
    %v259 = vpop.f32.mrf.mxu0
    %v260 = vadd.f32 %v135, %v259
    %261 = vmatmul.f32.gmra.mxu0 %v195
    %v262 = vpop.f32.mrf.mxu0
    %v263 = vadd.f32 %v140, %v262
    %264 = vmatmul.f32.gmra.mxu0 %v198
    %v265 = vpop.f32.mrf.mxu0
    %v266 = vadd.f32 %v145, %v265
    %267 = vmatmul.f32.gmra.mxu0 %v201
    %v268 = vpop.f32.mrf.mxu0
    %v269 = vadd.f32 %v150, %v268
    %270 = vmatmul.f32.gmra.mxu0 %v204
    %v271 = vpop.f32.mrf.mxu0
    %v272 = vadd.f32 %v155, %v271
    %273 = vdwg.mxu0
    %vm274 = vcmp.ge.f32.partialorder %v227, 0.0
    %vm275 = vcmp.ge.f32.partialorder %v230, 0.0
    %vm276 = vcmp.ge.f32.partialorder %v233, 0.0
    %vm277 = vcmp.ge.f32.partialorder %v236, 0.0
    %vm278 = vcmp.ge.f32.partialorder %v239, 0.0
    %vm279 = vcmp.ge.f32.partialorder %v242, 0.0
    %vm280 = vcmp.ge.f32.partialorder %v245, 0.0
    %vm281 = vcmp.ge.f32.partialorder %v248, 0.0
    %vm282 = vcmp.ge.f32.partialorder %v251, 0.0
    %vm283 = vcmp.ge.f32.partialorder %v254, 0.0
    %vm284 = vcmp.ge.f32.partialorder %v257, 0.0
    %vm285 = vcmp.ge.f32.partialorder %v260, 0.0
    %vm286 = vcmp.ge.f32.partialorder %v263, 0.0
    %vm287 = vcmp.ge.f32.partialorder %v266, 0.0
    %vm288 = vcmp.ge.f32.partialorder %v269, 0.0
    %vm289 = vcmp.ge.f32.partialorder %v272, 0.0
    %v290 = vstv %s42
    %v291 = vmul.f32 %v290, %v227
    %v292 = vmul.f32 %v290, %v230
    %v293 = vmul.f32 %v290, %v233
    %v294 = vmul.f32 %v290, %v236
    %v295 = vmul.f32 %v290, %v239
    %v296 = vmul.f32 %v290, %v242
    %v297 = vmul.f32 %v290, %v245
    %v298 = vmul.f32 %v290, %v248
    %v299 = vmul.f32 %v290, %v251
    %v300 = vmul.f32 %v290, %v254
    %v301 = vmul.f32 %v290, %v257
    %v302 = vmul.f32 %v290, %v260
    %v303 = vmul.f32 %v290, %v263
    %v304 = vmul.f32 %v290, %v266
    %v305 = vmul.f32 %v290, %v269
    %v306 = vmul.f32 %v290, %v272
    %v307 = vsel %vm274, %v227, %v291
    %v308 = vsel %vm275, %v230, %v292
    %v309 = vsel %vm276, %v233, %v293
    %v310 = vsel %vm277, %v236, %v294
    %v311 = vsel %vm278, %v239, %v295
    %v312 = vsel %vm279, %v242, %v296
    %v313 = vsel %vm280, %v245, %v297
    %v314 = vsel %vm281, %v248, %v298
    %v315 = vsel %vm282, %v251, %v299
    %v316 = vsel %vm283, %v254, %v300
    %v317 = vsel %vm284, %v257, %v301
    %v318 = vsel %vm285, %v260, %v302
    %v319 = vsel %vm286, %v263, %v303
    %v320 = vsel %vm287, %v266, %v304
    %v321 = vsel %vm288, %v269, %v305
    %v322 = vsel %vm289, %v272, %v306
    %v323 = vld [vmem:[%s4] sm:$0xff]
    %v324 = vld [vmem:[%s5] sm:$0xff]
    %326 = vset.pattern.permute.xlu0 0
    %327 = vperm.xlu0 %326, %v324
    %v328 = vpop.permute.xlu0 %327
    %330 = vmatpush.msra.mxu0 %v322
    %331 = vmatpush.msra.mxu0 %v321
    %332 = vmatpush.msra.mxu0 %v320
    %333 = vmatpush.msra.mxu0 %v319
    %334 = vmatpush.msra.mxu0 %v318
    %335 = vmatpush.msra.mxu0 %v317
    %336 = vmatpush.msra.mxu0 %v316
    %337 = vmatpush.msra.mxu0 %v315
    %338 = vmatpush.msra.mxu0 %v314
    %339 = vmatpush.msra.mxu0 %v313
    %340 = vmatpush.msra.mxu0 %v312
    %341 = vmatpush.msra.mxu0 %v311
    %342 = vmatpush.msra.mxu0 %v310
    %343 = vmatpush.msra.mxu0 %v309
    %344 = vmatpush.msra.mxu0 %v308
    %345 = vmatpush.msra.mxu0 %v307
    %346 = vmatmul.f32.gmra.mxu0 %v323
    %v347 = vpop.f32.mrf.mxu0
    %v348 = vadd.f32 %v328, %v347
    %349 = vdwg.mxu0
    %vm350 = vcmp.ge.f32.partialorder %v348, 0.0
    %v351 = vstv %s43
    %v352 = vmul.f32 %v351, %v348
    %v353 = vsel %vm350, %v348, %v352
    %v354 = vld [vmem:[%s7] sm:$0xff]
    %v355 = vld [vmem:[%s7 + $0x8] sm:$0xff]
    %v356 = vld [vmem:[%s6] sm:$0xff]
    %v357 = vld [vmem:[%s6 + $0x8] sm:$0xff]
    %359 = vset.pattern.permute.xlu0 0
    %360 = vperm.xlu0 %359, %v356
    %v361 = vpop.permute.xlu0 %360
    %364 = vset.pattern.permute.xlu0 0
    %365 = vperm.xlu0 %364, %v357
    %v366 = vpop.permute.xlu0 %365
    %v368 = vperm.slane %v353, 0
    %v369 = vmul.f32 %v361, %v368
    %v370 = vmul.f32 %v366, %v368
    %372 = vset.pattern.permute.xlu0 0
    %373 = vperm.xlu0 %372, %v354
    %v374 = vpop.permute.xlu0 %373
    %377 = vset.pattern.permute.xlu0 0
    %378 = vperm.xlu0 %377, %v355
    %v379 = vpop.permute.xlu0 %378
    %v381 = vadd.f32 %v374, %v369
    %v382 = vadd.f32 %v379, %v370
    %383 = vset.pattern.permute.xlu0 1
    %384 = vperm.xlu0 %383, %v356
    %v385 = vpop.permute.xlu0 %384
    %387 = vset.pattern.permute.xlu0 1
    %388 = vperm.xlu0 %387, %v357
    %v389 = vpop.permute.xlu0 %388
    %v391 = vperm.slane %v353, 1
    %v392 = vmul.f32 %v385, %v391
    %v393 = vmul.f32 %v389, %v391
    %v394 = vadd.f32 %v381, %v392
    %v395 = vadd.f32 %v382, %v393
    %vm396 = vcmask 64512
    %v397 = vsel %vm396, %v394, -inf
    %v398 = vsel %vm396, %v395, -inf
    %v399 = vmax.f32 %v397, %v398
    %v400 = vrot.slane %v399, 4
    %v401 = vmax.f32 %v399, %v400
    %v402 = vrot.slane %v401, 2
    %v403 = vmax.f32 %v401, %v402
    %v404 = vrot.slane %v403, 1
    %v405 = vmax.f32 %v403, %v404
    %v406 = vsub.f32 %v394, %v405
    %v407 = vsub.f32 %v395, %v405
    %v408 = vmul.f32 %v406, 1.442695
    %v409 = vpow.pop %v408
    %v410 = vmul.f32 %v407, 1.442695
    %v411 = vpow.pop %v410
    %v412 = vsel %vm396, %v409, 0.0
    %v413 = vsel %vm396, %v411, 0.0
    %v414 = vadd.f32 %v412, %v413
    %v415 = vrot.slane %v414, 4
    %v416 = vadd.f32 %v414, %v415
    %v417 = vrot.slane %v416, 2
    %v418 = vadd.f32 %v416, %v417
    %v419 = vrot.slane %v418, 1
    %v420 = vadd.f32 %v418, %v419
    %v421 = vlog2.pop %v420
    %v422 = vmul.f32 %v421, 0.6931472
    %v423 = vsub.f32 %v406, %v422
    %v424 = vsub.f32 %v407, %v422
    %425 = vst.msk [vmem:[%s8] sm:$0xff] %vm396, %v423
    %426 = vst.msk [vmem:[%s8 + $0x8] sm:$0xff] %vm396, %v424
    // Predicated region
    $region38: #{classification_net_forward.1} parent=1 // pred_check
      _
    $region39: #{classification_net_forward.1} parent=1 // pred_check_branch
      %428 = sbr.rel (0) target = $region41
    $region40: #{classification_net_forward.1} parent=1 // pred_region
      _
    $region41: #{classification_net_forward.1} parent=1 // pred_fallthru
      _
    // Predicated region
    $region42: #{classification_net_forward.1} parent=1 // pred_check
      _
    $region43: #{classification_net_forward.1} parent=1 // pred_check_branch
      %430 = sbr.rel (0) target = $region45
    $region44: #{classification_net_forward.1} parent=1 // pred_region
      _
    $region45: #{classification_net_forward.1} parent=1 // pred_fallthru
      _
    %431 = vsyncpa [#allocation3], 1

</llo_original>
